<compile_context>
chip_gen: v7x
topology: tpu7x:2x2x1
jax: 0.10.0
libtpu: 0.0.40
codegen_flags: <defaults>
</compile_context>

<pallas_src>
import jax
import jax.numpy as jnp
from jax.experimental import pallas as pl
from jax.experimental.pallas import tpu as pltpu

NUM_CLASSES = 14
IGNORE_INDEX = -100
_CLASS_WEIGHTS = (1.0, 20.0, 7.0, 6.0, 7.0, 5.0, 3.0, 39.0, 44.0, 8.0, 25.0, 1.0,
                  47.0, 13.0)
CLASS_WEIGHTS = jnp.array(_CLASS_WEIGHTS, dtype=jnp.float32)


def _criterion_kernel(outp_ref, labels_ref, mask_ref, out_ref, acc_ref, carry_ref):
    t = pl.program_id(1)
    nt = pl.num_programs(1)

    x = outp_ref[...].astype(jnp.float32)            # (Bt, C, Tt), native -> f32
    Bt, C, Tt = x.shape
    xe = x + 1e-10
    logx = jnp.log(xe)                               # = outp_wo_softmax tile
    lbl = labels_ref[...]                            # (Bt, 1, Tt) int32
    mask = mask_ref[...].astype(jnp.float32)         # (Bt, 1, Tt)

    # ---- per-B-tile init (t == 0): zero accumulators, seed temporal carry ---
    # Seeding the carry with column 0 makes d == 0 at the global first column,
    # which is exactly "no predecessor" for the MSE term.
    @pl.when(t == 0)
    def _init():
        acc_ref[...] = jnp.zeros_like(acc_ref)
        carry_ref[...] = logx[:, :, 0:1]

    # ---------------- weighted cross entropy (log_softmax over C) -----------
    # exp(logx) == x + eps exactly, so lse needs no max/exp pass; this is the
    # single remaining cross-sublane reduction.
    lse = jnp.log(jnp.sum(xe, axis=1, keepdims=True))                # (Bt,1,Tt)

    cls_iota = jax.lax.broadcasted_iota(jnp.int32, (1, C, 1), 1)     # (1,C,1)
    w = jnp.zeros((1, C, 1), jnp.float32)                            # constant weights
    for c, wc in enumerate(_CLASS_WEIGHTS):
        w = jnp.where(cls_iota == c, jnp.float32(wc), w)
    # weighted one-hot; identically 0 where label == ignore_index (-100).
    w_onehot = jnp.where(cls_iota == lbl, w, 0.0)                    # (Bt,C,Tt)

    # leading-axis sums are pure VALU; global XLU reduce deferred to finalize.
    acc_ref[0] += jnp.sum(w_onehot * (lse - logx), axis=0)           # (C,Tt) ce_num
    acc_ref[1] += jnp.sum(w_onehot, axis=0)                          # (C,Tt) ce_den

    # ---------------- clamped temporal MSE ----------------------------------
    # prev[j] = logx[j-1]; column 0 comes from the carry (previous T tile, or
    # column 0 itself at t == 0 which zeroes the diff).
    lane = jax.lax.broadcasted_iota(jnp.int32, (1, 1, Tt), 2)
    prev = jnp.where(lane == 0, carry_ref[...], pltpu.roll(logx, shift=1, axis=2))
    d = logx - prev
    sq = jnp.minimum(d * d, 16.0)            # lower clamp at 0 is a no-op for d*d
    acc_ref[2] += jnp.sum(sq * mask, axis=0)                         # (C,Tt) mse
    carry_ref[...] = logx[:, :, Tt - 1:Tt]   # halo for the next T tile

    # ---- finalize this B-tile: reduce accumulators, emit partial sums ------
    @pl.when(t == nt - 1)
    def _finalize():
        s_ce_num = jnp.sum(acc_ref[0])
        s_ce_den = jnp.sum(acc_ref[1])
        s_mse = jnp.sum(acc_ref[2])
        row = jax.lax.broadcasted_iota(jnp.int32, (1, 3, 128), 1)
        out_ref[...] = jnp.where(row == 0, s_ce_num,
                                 jnp.where(row == 1, s_ce_den, s_mse))


def _round_up(x, m):
    return -(-x // m) * m


def _tile_vmem_bytes(b, s, t, itemsize):
    pack = 8 * max(1, 4 // int(itemsize))        # sublane packing: 8/16/32 rows
    return b * _round_up(s, pack) * _round_up(t, 128) * int(itemsize)


def criterion(outp, labels, src_mask, labels_present=None, *,
              bt_max=8, tt_max=8192):
    """JAX/Pallas equivalent of CriterionClass.forward.

    labels_present is unused (as in the PyTorch forward)."""
    del labels_present
    B, C, T = outp.shape
    assert C == NUM_CLASSES, C
    assert bt_max % 8 == 0 and tt_max % 128 == 0

    labels3 = labels.astype(jnp.int32)[:, None, :]          # (B, 1, T)

    # ---- tile sizes: full dim if it fits, else hardware-aligned tiles -------
    if T > tt_max:
        Tt = tt_max
        Tp = _round_up(T, Tt)
    else:
        Tt = Tp = T
    if B > bt_max:
        Bt = bt_max
        Bp = _round_up(B, Bt)
    else:
        Bt = Bp = B

    def pad(a, widths, value):
        if all(wd == 0 for _, wd in widths):
            return a
        return jnp.pad(a, widths, constant_values=value)

    # Padding is inert: padded labels are ignore_index, padded mask is 0.
    outp_p = pad(outp, ((0, Bp - B), (0, 0), (0, Tp - T)), 0)
    labels_p = pad(labels3, ((0, Bp - B), (0, 0), (0, Tp - T)), IGNORE_INDEX)
    mask_p = pad(src_mask, ((0, Bp - B), (0, 0), (0, Tp - T)), 0)

    nb, nt = Bp // Bt, Tp // Tt
    grid = (nb, nt)

    # ---- explicit VMEM budget (double-buffered inputs + scratch) -----------
    vmem = 2 * (_tile_vmem_bytes(Bt, C, Tt, outp.dtype.itemsize)
                + _tile_vmem_bytes(Bt, 1, Tt, 4)
                + _tile_vmem_bytes(Bt, 1, Tt, src_mask.dtype.itemsize))
    vmem += 3 * _round_up(C, 8) * _round_up(Tt, 128) * 4     # acc scratch
    vmem += Bt * _round_up(C, 8) * 128 * 4                   # carry scratch
    vmem += 2 * 8 * 128 * 4                                  # output blocks
    vmem_limit = int(min(vmem * 1.25 + (8 << 20), 120 << 20))

    elems = Bp * C * Tp
    cost = pl.CostEstimate(
        flops=25 * elems,
        transcendentals=elems + Bp * Tp,                     # log(x+eps) + log(sum)
        bytes_accessed=int(outp_p.size * outp_p.dtype.itemsize
                           + labels_p.size * 4
                           + mask_p.size * mask_p.dtype.itemsize
                           + nb * 3 * 128 * 4),
    )

    partials = pl.pallas_call(
        _criterion_kernel,
        out_shape=jax.ShapeDtypeStruct((nb, 3, 128), jnp.float32),
        grid_spec=pltpu.PrefetchScalarGridSpec(
            num_scalar_prefetch=0,
            grid=grid,
            in_specs=[
                pl.BlockSpec((Bt, C, Tt), lambda b, t: (b, 0, t)),   # outp
                pl.BlockSpec((Bt, 1, Tt), lambda b, t: (b, 0, t)),   # labels (B,1,T)
                pl.BlockSpec((Bt, 1, Tt), lambda b, t: (b, 0, t)),   # src_mask
            ],
            out_specs=pl.BlockSpec((1, 3, 128), lambda b, t: (b, 0, 0)),
            scratch_shapes=[
                pltpu.VMEM((3, C, Tt), jnp.float32),   # [ce_num, ce_den, mse] partials
                pltpu.VMEM((Bt, C, 1), jnp.float32),   # temporal halo carry
            ],
        ),
        compiler_params=pltpu.CompilerParams(
            # B axis is megacore-parallel (per-B-tile outputs are independent);
            # the T axis carries the accumulator/halo, so it stays sequential.
            dimension_semantics=("parallel", "arbitrary"),
            vmem_limit_bytes=vmem_limit,
        ),
        cost_estimate=cost,
    )(outp_p, labels_p, mask_p)

    totals = jnp.sum(partials[:, :, 0], axis=0)              # (3,)
    # NOTE: ce is NaN if every label is ignore_index -- matches PyTorch.
    ce = totals[0] / totals[1]
    mse = 0.15 * totals[2] / jnp.float32(B * C * (T - 1))
    return {"full_loss": ce + mse, "ce_loss": ce, "mse_loss": mse}


def _reference(outp, labels, src_mask):
    """Pure-JAX reference mirroring the PyTorch module."""
    x = outp.astype(jnp.float32)
    logx = jnp.log(x + 1e-10)
    lsm = jax.nn.log_softmax(logx, axis=1)
    valid = labels != IGNORE_INDEX
    safe = jnp.where(valid, labels, 0)
    picked = jnp.take_along_axis(lsm, safe[:, None, :], axis=1)[:, 0, :]
    wsel = CLASS_WEIGHTS[safe] * valid.astype(jnp.float32)
    ce = jnp.sum(-picked * wsel) / jnp.sum(wsel)
    d = logx[:, :, 1:] - logx[:, :, :-1]
    mse = 0.15 * jnp.mean(jnp.clip(d * d, 0.0, 16.0)
                          * src_mask.astype(jnp.float32)[:, :, 1:])
    return {"full_loss": ce + mse, "ce_loss": ce, "mse_loss": mse}


if __name__ == "__main__":
    key = jax.random.PRNGKey(0)

    cases = [
        (2, 8, {}),                                # single tile, full dims
        (9, 300, dict(bt_max=8, tt_max=128)),      # B/T tiling + padding + halo carry
    ]
    for B, T, kw in cases:
        key, k1, k2, k3 = jax.random.split(key, 4)
        logits = jax.random.normal(k1, (B, NUM_CLASSES, T), dtype=jnp.float32)
        outp = jax.nn.softmax(logits, axis=1)       # probability-like input
        labels = jax.random.randint(k2, (B, T), 0, NUM_CLASSES, dtype=jnp.int32)
        labels = labels.at[0, T // 3].set(IGNORE_INDEX)   # exercise ignore_index
        src_mask = (jax.random.uniform(k3, (B, 1, T)) > 0.2).astype(jnp.float32)
        labels_present = jnp.ones((B,), jnp.float32)      # unused (as in PyTorch)

        got = criterion(outp, labels, src_mask, labels_present, **kw)
        got = jax.tree_util.tree_map(jax.block_until_ready, got)
        want = _reference(outp, labels, src_mask)
        for name in ("full_loss", "ce_loss", "mse_loss"):
            assert bool(jnp.isfinite(got[name])), (name, got[name])
            assert bool(jnp.allclose(got[name], want[name], rtol=2e-4, atol=1e-5)), (
                name, float(got[name]), float(want[name]))
    print("KERNEL_OK")
</pallas_src>

<mosaic_0001>
module attributes {stable_mosaic.version = 11 : i64} {
  func.func @_criterion_kernel(%arg0: i32, %arg1: i32, %arg2: memref<2x14x8xf32, #tpu.memory_space<vmem>>, %arg3: memref<2x1x8xi32, #tpu.memory_space<vmem>>, %arg4: memref<2x1x8xf32, #tpu.memory_space<vmem>>, %arg5: memref<1x3x128xf32, #tpu.memory_space<vmem>>, %arg6: memref<3x14x8xf32, #tpu.memory_space<vmem>>, %arg7: memref<2x14x1xf32, #tpu.memory_space<vmem>>) attributes {dimension_semantics = [#tpu.dimension_semantics<parallel>, #tpu.dimension_semantics<arbitrary>], iteration_bounds = array<i64: 1, 1>, scalar_prefetch = 0 : i64, scratch_operands = 2 : i64, tpu.core_type = #tpu.core_type<tc>, window_params = [{transform_indices = @transform_0, window_bounds = array<i64: 2, 14, 8>}, {transform_indices = @transform_1, window_bounds = array<i64: 2, 1, 8>}, {transform_indices = @transform_2, window_bounds = array<i64: 2, 1, 8>}, {transform_indices = @transform_3, window_bounds = array<i64: 1, 3, 128>}]} {
    %c0 = arith.constant 0 : index
    %c0_0 = arith.constant 0 : index
    %c0_1 = arith.constant 0 : index
    %0 = vector.load %arg2[%c0, %c0_0, %c0_1] : memref<2x14x8xf32, #tpu.memory_space<vmem>>, vector<2x14x8xf32>
    %cst = arith.constant 1.000000e-10 : f32
    %1 = vector.broadcast %cst : f32 to vector<2x14x8xf32>
    %2 = arith.addf %0, %1 : vector<2x14x8xf32>
    %3 = math.log %2 : vector<2x14x8xf32>
    %c0_2 = arith.constant 0 : index
    %c0_3 = arith.constant 0 : index
    %c0_4 = arith.constant 0 : index
    %4 = vector.load %arg3[%c0_2, %c0_3, %c0_4] : memref<2x1x8xi32, #tpu.memory_space<vmem>>, vector<2x1x8xi32>
    %c0_5 = arith.constant 0 : index
    %c0_6 = arith.constant 0 : index
    %c0_7 = arith.constant 0 : index
    %5 = vector.load %arg4[%c0_5, %c0_6, %c0_7] : memref<2x1x8xf32, #tpu.memory_space<vmem>>, vector<2x1x8xf32>
    %c0_i32 = arith.constant 0 : i32
    %6 = arith.cmpi eq, %arg1, %c0_i32 : i32
    %7 = arith.extui %6 : i1 to i32
    %c0_i32_8 = arith.constant 0 : i32
    %8 = arith.cmpi ne, %7, %c0_i32_8 : i32
    scf.if %8 {
      %cst_57 = arith.constant 0.000000e+00 : f32
      %122 = vector.broadcast %cst_57 : f32 to vector<3x14x8xf32>
      %c0_58 = arith.constant 0 : index
      %c0_59 = arith.constant 0 : index
      %c0_60 = arith.constant 0 : index
      %123 = vector.load %arg6[%c0_58, %c0_59, %c0_60] : memref<3x14x8xf32, #tpu.memory_space<vmem>>, vector<3x14x8xf32>
      tpu.vector_store %arg6[%c0_58, %c0_59, %c0_60], %122 {strides = array<i32>} : memref<3x14x8xf32, #tpu.memory_space<vmem>>, vector<3x14x8xf32>,
      %124 = vector.extract_strided_slice %3 {offsets = [0, 0, 0], sizes = [2, 14, 1], strides = [1, 1, 1]} : vector<2x14x8xf32> to vector<2x14x1xf32>
      %c0_61 = arith.constant 0 : index
      %c0_62 = arith.constant 0 : index
      %c0_63 = arith.constant 0 : index
      %125 = vector.load %arg7[%c0_61, %c0_62, %c0_63] : memref<2x14x1xf32, #tpu.memory_space<vmem>>, vector<2x14x1xf32>
      tpu.vector_store %arg7[%c0_61, %c0_62, %c0_63], %124 {strides = array<i32>} : memref<2x14x1xf32, #tpu.memory_space<vmem>>, vector<2x14x1xf32>,
    } else {
    }
    %cst_9 = arith.constant dense<0.000000e+00> : vector<2x8xf32>
    %9 = vector.multi_reduction <add>, %2, %cst_9 [1] : vector<2x14x8xf32> to vector<2x8xf32>
    %10 = vector.shape_cast %9 : vector<2x8xf32> to vector<2x1x8xf32>
    %11 = math.log %10 : vector<2x1x8xf32>
    %12 = tpu.iota {dimensions = array<i32: 1>} : vector<1x14x1xi32>
    %cst_10 = arith.constant 0.000000e+00 : f32
    %13 = vector.broadcast %cst_10 : f32 to vector<1x14x1xf32>
    %c0_i32_11 = arith.constant 0 : i32
    %14 = vector.broadcast %c0_i32_11 : i32 to vector<1x14x1xi32>
    %15 = arith.cmpi eq, %12, %14 : vector<1x14x1xi32>
    %cst_12 = arith.constant 1.000000e+00 : f32
    %16 = vector.broadcast %cst_12 : f32 to vector<1x14x1xf32>
    %17 = arith.select %15, %16, %13 : vector<1x14x1xi1>, vector<1x14x1xf32>
    %c1_i32 = arith.constant 1 : i32
    %18 = vector.broadcast %c1_i32 : i32 to vector<1x14x1xi32>
    %19 = arith.cmpi eq, %12, %18 : vector<1x14x1xi32>
    %cst_13 = arith.constant 2.000000e+01 : f32
    %20 = vector.broadcast %cst_13 : f32 to vector<1x14x1xf32>
    %21 = arith.select %19, %20, %17 : vector<1x14x1xi1>, vector<1x14x1xf32>
    %c2_i32 = arith.constant 2 : i32
    %22 = vector.broadcast %c2_i32 : i32 to vector<1x14x1xi32>
    %23 = arith.cmpi eq, %12, %22 : vector<1x14x1xi32>
    %cst_14 = arith.constant 7.000000e+00 : f32
    %24 = vector.broadcast %cst_14 : f32 to vector<1x14x1xf32>
    %25 = arith.select %23, %24, %21 : vector<1x14x1xi1>, vector<1x14x1xf32>
    %c3_i32 = arith.constant 3 : i32
    %26 = vector.broadcast %c3_i32 : i32 to vector<1x14x1xi32>
    %27 = arith.cmpi eq, %12, %26 : vector<1x14x1xi32>
    %cst_15 = arith.constant 6.000000e+00 : f32
    %28 = vector.broadcast %cst_15 : f32 to vector<1x14x1xf32>
    %29 = arith.select %27, %28, %25 : vector<1x14x1xi1>, vector<1x14x1xf32>
    %c4_i32 = arith.constant 4 : i32
    %30 = vector.broadcast %c4_i32 : i32 to vector<1x14x1xi32>
    %31 = arith.cmpi eq, %12, %30 : vector<1x14x1xi32>
    %cst_16 = arith.constant 7.000000e+00 : f32
    %32 = vector.broadcast %cst_16 : f32 to vector<1x14x1xf32>
    %33 = arith.select %31, %32, %29 : vector<1x14x1xi1>, vector<1x14x1xf32>
    %c5_i32 = arith.constant 5 : i32
    %34 = vector.broadcast %c5_i32 : i32 to vector<1x14x1xi32>
    %35 = arith.cmpi eq, %12, %34 : vector<1x14x1xi32>
    %cst_17 = arith.constant 5.000000e+00 : f32
    %36 = vector.broadcast %cst_17 : f32 to vector<1x14x1xf32>
    %37 = arith.select %35, %36, %33 : vector<1x14x1xi1>, vector<1x14x1xf32>
    %c6_i32 = arith.constant 6 : i32
    %38 = vector.broadcast %c6_i32 : i32 to vector<1x14x1xi32>
    %39 = arith.cmpi eq, %12, %38 : vector<1x14x1xi32>
    %cst_18 = arith.constant 3.000000e+00 : f32
    %40 = vector.broadcast %cst_18 : f32 to vector<1x14x1xf32>
    %41 = arith.select %39, %40, %37 : vector<1x14x1xi1>, vector<1x14x1xf32>
    %c7_i32 = arith.constant 7 : i32
    %42 = vector.broadcast %c7_i32 : i32 to vector<1x14x1xi32>
    %43 = arith.cmpi eq, %12, %42 : vector<1x14x1xi32>
    %cst_19 = arith.constant 3.900000e+01 : f32
    %44 = vector.broadcast %cst_19 : f32 to vector<1x14x1xf32>
    %45 = arith.select %43, %44, %41 : vector<1x14x1xi1>, vector<1x14x1xf32>
    %c8_i32 = arith.constant 8 : i32
    %46 = vector.broadcast %c8_i32 : i32 to vector<1x14x1xi32>
    %47 = arith.cmpi eq, %12, %46 : vector<1x14x1xi32>
    %cst_20 = arith.constant 4.400000e+01 : f32
    %48 = vector.broadcast %cst_20 : f32 to vector<1x14x1xf32>
    %49 = arith.select %47, %48, %45 : vector<1x14x1xi1>, vector<1x14x1xf32>
    %c9_i32 = arith.constant 9 : i32
    %50 = vector.broadcast %c9_i32 : i32 to vector<1x14x1xi32>
    %51 = arith.cmpi eq, %12, %50 : vector<1x14x1xi32>
    %cst_21 = arith.constant 8.000000e+00 : f32
    %52 = vector.broadcast %cst_21 : f32 to vector<1x14x1xf32>
    %53 = arith.select %51, %52, %49 : vector<1x14x1xi1>, vector<1x14x1xf32>
    %c10_i32 = arith.constant 10 : i32
    %54 = vector.broadcast %c10_i32 : i32 to vector<1x14x1xi32>
    %55 = arith.cmpi eq, %12, %54 : vector<1x14x1xi32>
    %cst_22 = arith.constant 2.500000e+01 : f32
    %56 = vector.broadcast %cst_22 : f32 to vector<1x14x1xf32>
    %57 = arith.select %55, %56, %53 : vector<1x14x1xi1>, vector<1x14x1xf32>
    %c11_i32 = arith.constant 11 : i32
    %58 = vector.broadcast %c11_i32 : i32 to vector<1x14x1xi32>
    %59 = arith.cmpi eq, %12, %58 : vector<1x14x1xi32>
    %cst_23 = arith.constant 1.000000e+00 : f32
    %60 = vector.broadcast %cst_23 : f32 to vector<1x14x1xf32>
    %61 = arith.select %59, %60, %57 : vector<1x14x1xi1>, vector<1x14x1xf32>
    %c12_i32 = arith.constant 12 : i32
    %62 = vector.broadcast %c12_i32 : i32 to vector<1x14x1xi32>
    %63 = arith.cmpi eq, %12, %62 : vector<1x14x1xi32>
    %cst_24 = arith.constant 4.700000e+01 : f32
    %64 = vector.broadcast %cst_24 : f32 to vector<1x14x1xf32>
    %65 = arith.select %63, %64, %61 : vector<1x14x1xi1>, vector<1x14x1xf32>
    %c13_i32 = arith.constant 13 : i32
    %66 = vector.broadcast %c13_i32 : i32 to vector<1x14x1xi32>
    %67 = arith.cmpi eq, %12, %66 : vector<1x14x1xi32>
    %cst_25 = arith.constant 1.300000e+01 : f32
    %68 = vector.broadcast %cst_25 : f32 to vector<1x14x1xf32>
    %69 = arith.select %67, %68, %65 : vector<1x14x1xi1>, vector<1x14x1xf32>
    %70 = vector.broadcast %12 : vector<1x14x1xi32> to vector<2x14x8xi32>
    %71 = vector.broadcast %4 : vector<2x1x8xi32> to vector<2x14x8xi32>
    %72 = arith.cmpi eq, %70, %71 : vector<2x14x8xi32>
    %cst_26 = arith.constant 0.000000e+00 : f32
    %73 = vector.shape_cast %69 : vector<1x14x1xf32> to vector<1x14x1xf32>
    %74 = vector.broadcast %73 : vector<1x14x1xf32> to vector<2x14x8xf32>
    %75 = vector.broadcast %cst_26 : f32 to vector<2x14x8xf32>
    %76 = arith.select %72, %74, %75 : vector<2x14x8xi1>, vector<2x14x8xf32>
    %c0_27 = arith.constant 0 : index
    %c0_28 = arith.constant 0 : index
    %c0_29 = arith.constant 0 : index
    %77 = vector.load %arg6[%c0_27, %c0_28, %c0_29] : memref<3x14x8xf32, #tpu.memory_space<vmem>>, vector<1x14x8xf32>
    %78 = vector.shape_cast %77 : vector<1x14x8xf32> to vector<14x8xf32>
    %79 = vector.broadcast %11 : vector<2x1x8xf32> to vector<2x14x8xf32>
    %80 = arith.subf %79, %3 : vector<2x14x8xf32>
    %81 = arith.mulf %76, %80 : vector<2x14x8xf32>
    %cst_30 = arith.constant dense<0.000000e+00> : vector<14x8xf32>
    %82 = vector.multi_reduction <add>, %81, %cst_30 [0] : vector<2x14x8xf32> to vector<14x8xf32>
    %83 = arith.addf %78, %82 : vector<14x8xf32>
    %c0_31 = arith.constant 0 : index
    %c0_32 = arith.constant 0 : index
    %c0_33 = arith.constant 0 : index
    %84 = vector.load %arg6[%c0_31, %c0_32, %c0_33] : memref<3x14x8xf32, #tpu.memory_space<vmem>>, vector<1x14x8xf32>
    %85 = vector.shape_cast %84 : vector<1x14x8xf32> to vector<14x8xf32>
    %86 = vector.shape_cast %83 : vector<14x8xf32> to vector<1x14x8xf32>
    tpu.vector_store %arg6[%c0_31, %c0_32, %c0_33], %86 {strides = array<i32>} : memref<3x14x8xf32, #tpu.memory_space<vmem>>, vector<1x14x8xf32>,
    %c1 = arith.constant 1 : index
    %c0_34 = arith.constant 0 : index
    %c0_35 = arith.constant 0 : index
    %87 = vector.load %arg6[%c1, %c0_34, %c0_35] : memref<3x14x8xf32, #tpu.memory_space<vmem>>, vector<1x14x8xf32>
    %88 = vector.shape_cast %87 : vector<1x14x8xf32> to vector<14x8xf32>
    %cst_36 = arith.constant dense<0.000000e+00> : vector<14x8xf32>
    %89 = vector.multi_reduction <add>, %76, %cst_36 [0] : vector<2x14x8xf32> to vector<14x8xf32>
    %90 = arith.addf %88, %89 : vector<14x8xf32>
    %c1_37 = arith.constant 1 : index
    %c0_38 = arith.constant 0 : index
    %c0_39 = arith.constant 0 : index
    %91 = vector.load %arg6[%c1_37, %c0_38, %c0_39] : memref<3x14x8xf32, #tpu.memory_space<vmem>>, vector<1x14x8xf32>
    %92 = vector.shape_cast %91 : vector<1x14x8xf32> to vector<14x8xf32>
    %93 = vector.shape_cast %90 : vector<14x8xf32> to vector<1x14x8xf32>
    tpu.vector_store %arg6[%c1_37, %c0_38, %c0_39], %93 {strides = array<i32>} : memref<3x14x8xf32, #tpu.memory_space<vmem>>, vector<1x14x8xf32>,
    %94 = tpu.iota {dimensions = array<i32: 2>} : vector<1x1x8xi32>
    %c0_i32_40 = arith.constant 0 : i32
    %95 = vector.broadcast %c0_i32_40 : i32 to vector<1x1x8xi32>
    %96 = arith.cmpi eq, %94, %95 : vector<1x1x8xi32>
    %c0_41 = arith.constant 0 : index
    %c0_42 = arith.constant 0 : index
    %c0_43 = arith.constant 0 : index
    %97 = vector.load %arg7[%c0_41, %c0_42, %c0_43] : memref<2x14x1xf32, #tpu.memory_space<vmem>>, vector<2x14x1xf32>
    %c1_i32_44 = arith.constant 1 : i32
    %98 = tpu.dynamic_rotate %3 by %c1_i32_44 dim 2 : vector<2x14x8xf32>, i32 -> vector<2x14x8xf32>
    %99 = vector.shape_cast %96 : vector<1x1x8xi1> to vector<1x1x8xi1>
    %100 = vector.broadcast %99 : vector<1x1x8xi1> to vector<2x14x8xi1>
    %101 = vector.shape_cast %97 : vector<2x14x1xf32> to vector<2x14x1xf32>
    %102 = vector.broadcast %101 : vector<2x14x1xf32> to vector<2x14x8xf32>
    %103 = arith.select %100, %102, %98 : vector<2x14x8xi1>, vector<2x14x8xf32>
    %104 = arith.subf %3, %103 : vector<2x14x8xf32>
    %105 = arith.mulf %104, %104 : vector<2x14x8xf32>
    %cst_45 = arith.constant 1.600000e+01 : f32
    %106 = vector.broadcast %cst_45 : f32 to vector<2x14x8xf32>
    %107 = arith.minimumf %105, %106 : vector<2x14x8xf32>
    %c2 = arith.constant 2 : index
    %c0_46 = arith.constant 0 : index
    %c0_47 = arith.constant 0 : index
    %108 = vector.load %arg6[%c2, %c0_46, %c0_47] : memref<3x14x8xf32, #tpu.memory_space<vmem>>, vector<1x14x8xf32>
    %109 = vector.shape_cast %108 : vector<1x14x8xf32> to vector<14x8xf32>
    %110 = vector.broadcast %5 : vector<2x1x8xf32> to vector<2x14x8xf32>
    %111 = arith.mulf %107, %110 : vector<2x14x8xf32>
    %cst_48 = arith.constant dense<0.000000e+00> : vector<14x8xf32>
    %112 = vector.multi_reduction <add>, %111, %cst_48 [0] : vector<2x14x8xf32> to vector<14x8xf32>
    %113 = arith.addf %109, %112 : vector<14x8xf32>
    %c2_49 = arith.constant 2 : index
    %c0_50 = arith.constant 0 : index
    %c0_51 = arith.constant 0 : index
    %114 = vector.load %arg6[%c2_49, %c0_50, %c0_51] : memref<3x14x8xf32, #tpu.memory_space<vmem>>, vector<1x14x8xf32>
    %115 = vector.shape_cast %114 : vector<1x14x8xf32> to vector<14x8xf32>
    %116 = vector.shape_cast %113 : vector<14x8xf32> to vector<1x14x8xf32>
    tpu.vector_store %arg6[%c2_49, %c0_50, %c0_51], %116 {strides = array<i32>} : memref<3x14x8xf32, #tpu.memory_space<vmem>>, vector<1x14x8xf32>,
    %117 = vector.extract_strided_slice %3 {offsets = [0, 0, 7], sizes = [2, 14, 1], strides = [1, 1, 1]} : vector<2x14x8xf32> to vector<2x14x1xf32>
    %c0_52 = arith.constant 0 : index
    %c0_53 = arith.constant 0 : index
    %c0_54 = arith.constant 0 : index
    %118 = vector.load %arg7[%c0_52, %c0_53, %c0_54] : memref<2x14x1xf32, #tpu.memory_space<vmem>>, vector<2x14x1xf32>
    tpu.vector_store %arg7[%c0_52, %c0_53, %c0_54], %117 {strides = array<i32>} : memref<2x14x1xf32, #tpu.memory_space<vmem>>, vector<2x14x1xf32>,
    %c0_i32_55 = arith.constant 0 : i32
    %119 = arith.cmpi eq, %arg1, %c0_i32_55 : i32
    %120 = arith.extui %119 : i1 to i32
    %c0_i32_56 = arith.constant 0 : i32
    %121 = arith.cmpi ne, %120, %c0_i32_56 : i32
    scf.if %121 {
      %c0_57 = arith.constant 0 : index
      %c0_58 = arith.constant 0 : index
      %c0_59 = arith.constant 0 : index
      %122 = vector.load %arg6[%c0_57, %c0_58, %c0_59] : memref<3x14x8xf32, #tpu.memory_space<vmem>>, vector<1x14x8xf32>
      %123 = vector.shape_cast %122 : vector<1x14x8xf32> to vector<14x8xf32>
      %124 = vector.shape_cast %123 : vector<14x8xf32> to vector<1x14x8xf32>
      %cst_60 = arith.constant dense<0.000000e+00> : vector<1xf32>
      %125 = vector.multi_reduction <add>, %124, %cst_60 [1, 2] : vector<1x14x8xf32> to vector<1xf32>
      %126 = vector.shape_cast %125 : vector<1xf32> to vector<1x1x1xf32>
      %127 = vector.extract %126[0, 0, 0] : f32 from vector<1x1x1xf32>
      %c1_61 = arith.constant 1 : index
      %c0_62 = arith.constant 0 : index
      %c0_63 = arith.constant 0 : index
      %128 = vector.load %arg6[%c1_61, %c0_62, %c0_63] : memref<3x14x8xf32, #tpu.memory_space<vmem>>, vector<1x14x8xf32>
      %129 = vector.shape_cast %128 : vector<1x14x8xf32> to vector<14x8xf32>
      %130 = vector.shape_cast %129 : vector<14x8xf32> to vector<1x14x8xf32>
      %cst_64 = arith.constant dense<0.000000e+00> : vector<1xf32>
      %131 = vector.multi_reduction <add>, %130, %cst_64 [1, 2] : vector<1x14x8xf32> to vector<1xf32>
      %132 = vector.shape_cast %131 : vector<1xf32> to vector<1x1x1xf32>
      %133 = vector.extract %132[0, 0, 0] : f32 from vector<1x1x1xf32>
      %c2_65 = arith.constant 2 : index
      %c0_66 = arith.constant 0 : index
      %c0_67 = arith.constant 0 : index
      %134 = vector.load %arg6[%c2_65, %c0_66, %c0_67] : memref<3x14x8xf32, #tpu.memory_space<vmem>>, vector<1x14x8xf32>
      %135 = vector.shape_cast %134 : vector<1x14x8xf32> to vector<14x8xf32>
      %136 = vector.shape_cast %135 : vector<14x8xf32> to vector<1x14x8xf32>
      %cst_68 = arith.constant dense<0.000000e+00> : vector<1xf32>
      %137 = vector.multi_reduction <add>, %136, %cst_68 [1, 2] : vector<1x14x8xf32> to vector<1xf32>
      %138 = vector.shape_cast %137 : vector<1xf32> to vector<1x1x1xf32>
      %139 = vector.extract %138[0, 0, 0] : f32 from vector<1x1x1xf32>
      %140 = tpu.iota {dimensions = array<i32: 1>} : vector<1x3x128xi32>
      %c0_i32_69 = arith.constant 0 : i32
      %141 = vector.broadcast %c0_i32_69 : i32 to vector<1x3x128xi32>
      %142 = arith.cmpi eq, %140, %141 : vector<1x3x128xi32>
      %c1_i32_70 = arith.constant 1 : i32
      %143 = vector.broadcast %c1_i32_70 : i32 to vector<1x3x128xi32>
      %144 = arith.cmpi eq, %140, %143 : vector<1x3x128xi32>
      %145 = vector.broadcast %133 : f32 to vector<1x3x128xf32>
      %146 = vector.broadcast %139 : f32 to vector<1x3x128xf32>
      %147 = arith.select %144, %145, %146 : vector<1x3x128xi1>, vector<1x3x128xf32>
      %148 = vector.broadcast %127 : f32 to vector<1x3x128xf32>
      %149 = arith.select %142, %148, %147 : vector<1x3x128xi1>, vector<1x3x128xf32>
      %c0_71 = arith.constant 0 : index
      %c0_72 = arith.constant 0 : index
      %c0_73 = arith.constant 0 : index
      %150 = vector.load %arg5[%c0_71, %c0_72, %c0_73] : memref<1x3x128xf32, #tpu.memory_space<vmem>>, vector<1x3x128xf32>
      tpu.vector_store %arg5[%c0_71, %c0_72, %c0_73], %149 {strides = array<i32>} : memref<1x3x128xf32, #tpu.memory_space<vmem>>, vector<1x3x128xf32>,
    } else {
    }
    return
  }
  func.func @transform_0(%arg0: i32, %arg1: i32) -> (i32, i32, i32) {
    %c0_i32 = arith.constant 0 : i32
    %c0_i32_0 = arith.constant 0 : i32
    return %arg0, %c0_i32, %arg1 : i32, i32, i32
  }
  func.func @transform_1(%arg0: i32, %arg1: i32) -> (i32, i32, i32) {
    %c0_i32 = arith.constant 0 : i32
    %c0_i32_0 = arith.constant 0 : i32
    return %arg0, %c0_i32, %arg1 : i32, i32, i32
  }
  func.func @transform_2(%arg0: i32, %arg1: i32) -> (i32, i32, i32) {
    %c0_i32 = arith.constant 0 : i32
    %c0_i32_0 = arith.constant 0 : i32
    return %arg0, %c0_i32, %arg1 : i32, i32, i32
  }
  func.func @transform_3(%arg0: i32, %arg1: i32) -> (i32, i32, i32) {
    %c0_i32 = arith.constant 0 : i32
    %c0_i32_0 = arith.constant 0 : i32
    %c0_i32_1 = arith.constant 0 : i32
    return %arg0, %c0_i32, %c0_i32_0 : i32, i32, i32
  }
}

</mosaic_0001>

<llo_original>
// kernel: tpu_custom_call.1
$region0: #{tpu_custom_call.1}
  #allocation0 [shape = 'u32[]', space=smem, size = 0x4, offset = 0x4, fixed_abs, tag = 'smem constant byte address 0x4 - core index']
  #allocation1 [shape = 'u32[144,128]{1,0:T(1,128)}', space=vmem, size = 0x12000, scoped, tag = 'internal scratch']
  #allocation2 [shape = 'f32[3,14,8]{2,1,0:T(8,128)}', space=vmem, size = 0x6000, scoped, tag = 'scratch operand']
  #allocation3 [shape = 'f32[2,14,1]{2,1,0:T(8,128)}', space=vmem, size = 0x4000, scoped, tag = 'scratch operand']
  %s0 = inlined_call_operand.vmem [shape: f32[2,14,8], index: 0, kind: input, shape index: {}]
  %s1 = inlined_call_operand.vmem [shape: s32[2,1,8], index: 1, kind: input, shape index: {}]
  %s2 = inlined_call_operand.vmem [shape: f32[2,1,8], index: 2, kind: input, shape index: {}]
  %s3 = inlined_call_operand.vmem [shape: f32[1,3,128], index: 3, kind: output, shape index: {}]
  %s4 = sld [smem:[#allocation0]]
  $region30: #{tpu_custom_call.1} parent=0
    _
  %s6 = ssub.s32 1, %s4
  %s7 = scalar_select 0, %s6, %s4
  // Predicated region
  $region2: #{tpu_custom_call.1} parent=0 // pred_check
    _
  $region3: #{tpu_custom_call.1} parent=0 // pred_check_branch
    %9 = sbr.rel (0) target = $region5
  $region4: #{tpu_custom_call.1} parent=0 // pred_region
    _
  $region5: #{tpu_custom_call.1} parent=0 // pred_fallthru
    _
  // Predicated region
  $region6: #{tpu_custom_call.1} parent=0 // pred_check
    _
  $region7: #{tpu_custom_call.1} parent=0 // pred_check_branch
    %11 = sbr.rel (0) target = $region9
  $region8: #{tpu_custom_call.1} parent=0 // pred_region
    _
  $region9: #{tpu_custom_call.1} parent=0 // pred_fallthru
    _
  // Predicated region
  $region10: #{tpu_custom_call.1} parent=0 // pred_check
    _
  $region11: #{tpu_custom_call.1} parent=0 // pred_check_branch
    %13 = sbr.rel (0) target = $region13
  $region12: #{tpu_custom_call.1} parent=0 // pred_region
    _
  $region13: #{tpu_custom_call.1} parent=0 // pred_fallthru
    _
  %v14 = vld [vmem:[%s0] sm:$0xff]
  %v15 = vld [vmem:[%s0 + $0x8] sm:$0x3f]
  %v16 = vld [vmem:[%s0 + $0x10] sm:$0xff]
  %v17 = vld [vmem:[%s0 + $0x18] sm:$0x3f]
  %v18 = vadd.f32 %v14, 1e-10
  %v19 = vadd.f32 %v15, 1e-10
  %v20 = vadd.f32 %v16, 1e-10
  %v21 = vadd.f32 %v17, 1e-10
  %v22 = vlog2.pop %v18
  %v23 = vmul.f32 %v22, 0.6931472
  %v24 = vlog2.pop %v19
  %v25 = vmul.f32 %v24, 0.6931472
  %v26 = vlog2.pop %v20
  %v27 = vmul.f32 %v26, 0.6931472
  %v28 = vlog2.pop %v21
  %v29 = vmul.f32 %v28, 0.6931472
  %v30 = vld [vmem:[%s1] sm:$0x1]
  %v31 = vld [vmem:[%s1 + $0x1] sm:$0x1]
  %v32 = vld [vmem:[%s2] sm:$0x1]
  %v33 = vld [vmem:[%s2 + $0x1] sm:$0x1]
  %p34 = scmp.eq.s32.totalorder 0, 0
  // Predicated region
  $region14: #{tpu_custom_call.1} parent=0 // pred_check
    %p35 = pneg %p34
  $region15: #{tpu_custom_call.1} parent=0 // pred_check_branch
    %37 = sbr.rel (%p35) target = $region17
  $region16: #{tpu_custom_call.1} parent=0 // pred_region
    %vm38 = vcmask 64512
    %39 = vst.msk [vmem:[#allocation2] sm:$0xff] %vm38, 0.0
    %vm40 = vcmask 62464
    %41 = vst.msk [vmem:[#allocation2 + $0x8] sm:$0x3f] %vm40, 0.0
    %42 = vst.msk [vmem:[#allocation2 + $0x10] sm:$0xff] %vm38, 0.0
    %43 = vst.msk [vmem:[#allocation2 + $0x18] sm:$0x3f] %vm40, 0.0
    %44 = vst.msk [vmem:[#allocation2 + $0x20] sm:$0xff] %vm38, 0.0
    %45 = vst.msk [vmem:[#allocation2 + $0x28] sm:$0x3f] %vm40, 0.0
    %vm46 = vcmask 7168
    %47 = vst.msk [vmem:[#allocation3] sm:$0xff] %vm46, %v23
    %vm48 = vcmask 5120
    %49 = vst.msk [vmem:[#allocation3 + $0x8] sm:$0x3f] %vm48, %v25
    %50 = vst.msk [vmem:[#allocation3 + $0x10] sm:$0xff] %vm46, %v27
    %51 = vst.msk [vmem:[#allocation3 + $0x18] sm:$0x3f] %vm48, %v29
  $region17: #{tpu_custom_call.1} parent=0 // pred_fallthru
    _
  %vm52 = vcmask 64512
  %v53 = vsel %vm52, %v18, 0.0
  %vm54 = vcmask 62464
  %v55 = vsel %vm54, %v19, 0.0
  %v56 = vadd.f32 %v53, %v55
  %v57 = vrot.slane %v56, 4
  %v58 = vadd.f32 %v56, %v57
  %v59 = vrot.slane %v58, 2
  %v60 = vadd.f32 %v58, %v59
  %v61 = vrot.slane %v60, 1
  %v62 = vadd.f32 %v60, %v61
  %v63 = vsel %vm52, %v20, 0.0
  %v64 = vsel %vm54, %v21, 0.0
  %v65 = vadd.f32 %v63, %v64
  %v66 = vrot.slane %v65, 4
  %v67 = vadd.f32 %v65, %v66
  %v68 = vrot.slane %v67, 2
  %v69 = vadd.f32 %v67, %v68
  %v70 = vrot.slane %v69, 1
  %v71 = vadd.f32 %v69, %v70
  %v72 = vlog2.pop %v62
  %v73 = vmul.f32 %v72, 0.6931472
  %v74 = vlog2.pop %v71
  %v75 = vmul.f32 %v74, 0.6931472
  %v76 = vlaneseq
  %v77 = vshrl.u32 %v76, 7
  %v78 = vadd.s32 %v77, 8
  %vm79 = vcmp.eq.s32.totalorder %v77, 0
  %vm80 = vcmp.eq.s32.totalorder %v78, 0
  %v81 = vsel %vm79, 1.0, 0.0
  %v82 = vsel %vm80, 1.0, 0.0
  %vm83 = vcmp.eq.s32.totalorder %v77, 1
  %vm84 = vcmp.eq.s32.totalorder %v78, 1
  %v85 = vsel %vm83, 20.0, %v81
  %v86 = vsel %vm84, 20.0, %v82
  %vm87 = vcmp.eq.s32.totalorder %v77, 2
  %vm88 = vcmp.eq.s32.totalorder %v78, 2
  %v89 = vsel %vm87, 7.0, %v85
  %v90 = vsel %vm88, 7.0, %v86
  %vm91 = vcmp.eq.s32.totalorder %v77, 3
  %vm92 = vcmp.eq.s32.totalorder %v78, 3
  %v93 = vsel %vm91, 6.0, %v89
  %v94 = vsel %vm92, 6.0, %v90
  %vm95 = vcmp.eq.s32.totalorder %v77, 4
  %vm96 = vcmp.eq.s32.totalorder %v78, 4
  %v97 = vsel %vm95, 7.0, %v93
  %v98 = vsel %vm96, 7.0, %v94
  %vm99 = vcmp.eq.s32.totalorder %v77, 5
  %vm100 = vcmp.eq.s32.totalorder %v78, 5
  %v101 = vsel %vm99, 5.0, %v97
  %v102 = vsel %vm100, 5.0, %v98
  %vm103 = vcmp.eq.s32.totalorder %v77, 6
  %vm104 = vcmp.eq.s32.totalorder %v78, 6
  %v105 = vsel %vm103, 3.0, %v101
  %v106 = vsel %vm104, 3.0, %v102
  %vm107 = vcmp.eq.s32.totalorder %v77, 7
  %vm108 = vcmp.eq.s32.totalorder %v78, 7
  %v109 = vsel %vm107, 39.0, %v105
  %v110 = vsel %vm108, 39.0, %v106
  %vm111 = vcmp.eq.s32.totalorder %v77, 8
  %vm112 = vcmp.eq.s32.totalorder %v78, 8
  %v113 = vsel %vm111, 44.0, %v109
  %v114 = vsel %vm112, 44.0, %v110
  %vm115 = vcmp.eq.s32.totalorder %v77, 9
  %vm116 = vcmp.eq.s32.totalorder %v78, 9
  %v117 = vsel %vm115, 8.0, %v113
  %v118 = vsel %vm116, 8.0, %v114
  %vm119 = vcmp.eq.s32.totalorder %v77, 10
  %vm120 = vcmp.eq.s32.totalorder %v78, 10
  %v121 = vsel %vm119, 25.0, %v117
  %v122 = vsel %vm120, 25.0, %v118
  %vm123 = vcmp.eq.s32.totalorder %v77, 11
  %vm124 = vcmp.eq.s32.totalorder %v78, 11
  %v125 = vsel %vm123, 1.0, %v121
  %v126 = vsel %vm124, 1.0, %v122
  %vm127 = vcmp.eq.s32.totalorder %v77, 12
  %vm128 = vcmp.eq.s32.totalorder %v78, 12
  %v129 = vsel %vm127, 47.0, %v125
  %v130 = vsel %vm128, 47.0, %v126
  %vm131 = vcmp.eq.s32.totalorder %v77, 13
  %vm132 = vcmp.eq.s32.totalorder %v78, 13
  %v133 = vsel %vm131, 13.0, %v129
  %v134 = vsel %vm132, 13.0, %v130
  %v135 = vlaneseq
  %v136 = vshrl.u32 %v135, 7
  %v137 = vsub.s32 0, %v136
  %v138 = vrot.slane %v30, %v137
  %v139 = vlaneseq
  %v140 = vshrl.u32 %v139, 7
  %v141 = vsub.s32 0, %v140
  %v142 = vrot.slane %v31, %v141
  %vm143 = vcmp.eq.s32.totalorder %v77, %v138
  %vm144 = vcmp.eq.s32.totalorder %v78, %v138
  %vm145 = vcmp.eq.s32.totalorder %v77, %v142
  %vm146 = vcmp.eq.s32.totalorder %v78, %v142
  %v147 = vsel %vm143, %v133, 0.0
  %v148 = vsel %vm144, %v134, 0.0
  %v149 = vsel %vm145, %v133, 0.0
  %v150 = vsel %vm146, %v134, 0.0
  %v151 = vld [vmem:[#allocation2] sm:$0xff]
  %v152 = vld [vmem:[#allocation2 + $0x8] sm:$0x3f]
  %v153 = vsub.f32 %v73, %v23
  %v154 = vsub.f32 %v73, %v25
  %v155 = vsub.f32 %v75, %v27
  %v156 = vsub.f32 %v75, %v29
  %v157 = vmul.f32 %v147, %v153
  %v158 = vmul.f32 %v148, %v154
  %v159 = vmul.f32 %v149, %v155
  %v160 = vmul.f32 %v150, %v156
  %v161 = vsel %vm52, %v157, 0.0
  %v162 = vsel %vm52, %v159, 0.0
  %v163 = vadd.f32 %v161, %v162
  %v164 = vsel %vm54, %v158, 0.0
  %v165 = vsel %vm54, %v160, 0.0
  %v166 = vadd.f32 %v164, %v165
  %v167 = vadd.f32 %v151, %v163
  %v168 = vadd.f32 %v152, %v166
  %169 = vst.msk [vmem:[#allocation2] sm:$0xff] %vm52, %v167
  %170 = vst.msk [vmem:[#allocation2 + $0x8] sm:$0x3f] %vm54, %v168
  %s171 = scalar_lea.vmem [#allocation2], 16
  %v172 = vld [vmem:[%s171] sm:$0xff]
  %v173 = vld [vmem:[%s171 + $0x8] sm:$0x3f]
  %v174 = vsel %vm52, %v147, 0.0
  %v175 = vsel %vm52, %v149, 0.0
  %v176 = vadd.f32 %v174, %v175
  %v177 = vsel %vm54, %v148, 0.0
  %v178 = vsel %vm54, %v150, 0.0
  %v179 = vadd.f32 %v177, %v178
  %v180 = vadd.f32 %v172, %v176
  %v181 = vadd.f32 %v173, %v179
  %182 = vst.msk [vmem:[%s171] sm:$0xff] %vm52, %v180
  %183 = vst.msk [vmem:[%s171 + $0x8] sm:$0x3f] %vm54, %v181
  %v184 = vlaneseq
  %v185 = vand.u32 %v184, 127
  %vm186 = vcmp.eq.s32.totalorder %v185, 0
  %v187 = vld [vmem:[#allocation3] sm:$0xff]
  %v188 = vld [vmem:[#allocation3 + $0x8] sm:$0x3f]
  %v189 = vld [vmem:[#allocation3 + $0x10] sm:$0xff]
  %v190 = vld [vmem:[#allocation3 + $0x18] sm:$0x3f]
  %vm191 = vcmask 1047616
  %192 = vrot.lane.b32.xlu0 %v23, 8
  %v193 = vpop.permute.xlu0 %192
  %v194 = vsel %vm191, %v193, %v23
  %195 = vrot.lane.b32.xlu0 %v25, 8
  %v196 = vpop.permute.xlu0 %195
  %v197 = vsel %vm191, %v196, %v25
  %198 = vrot.lane.b32.xlu0 %v27, 8
  %v199 = vpop.permute.xlu0 %198
  %v200 = vsel %vm191, %v199, %v27
  %201 = vrot.lane.b32.xlu0 %v29, 8
  %v202 = vpop.permute.xlu0 %201
  %v203 = vsel %vm191, %v202, %v29
  %204 = vrot.lane.b32.xlu0 %v194, 8
  %v205 = vpop.permute.xlu0 %204
  %206 = vrot.lane.b32.xlu0 %v197, 8
  %v207 = vpop.permute.xlu0 %206
  %208 = vrot.lane.b32.xlu0 %v200, 8
  %v209 = vpop.permute.xlu0 %208
  %210 = vrot.lane.b32.xlu0 %v203, 8
  %v211 = vpop.permute.xlu0 %210
  %v212 = vsel %vm191, %v205, %v23
  %v213 = vsel %vm191, %v207, %v25
  %v214 = vsel %vm191, %v209, %v27
  %v215 = vsel %vm191, %v211, %v29
  %v216 = vsel %vm186, 1, 0
  %vm217 = vcmp.eq.s32.totalorder %v216, 1
  %219 = vset.pattern.permute.xlu0 0
  %220 = vperm.xlu0 %219, %v187
  %v221 = vpop.permute.xlu0 %220
  %224 = vset.pattern.permute.xlu0 0
  %225 = vperm.xlu0 %224, %v188
  %v226 = vpop.permute.xlu0 %225
  %229 = vset.pattern.permute.xlu0 0
  %230 = vperm.xlu0 %229, %v189
  %v231 = vpop.permute.xlu0 %230
  %234 = vset.pattern.permute.xlu0 0
  %235 = vperm.xlu0 %234, %v190
  %v236 = vpop.permute.xlu0 %235
  %242 = vrot.lane.b32.xlu0 %v212, 121
  %v243 = vpop.permute.xlu0 %242
  %244 = vrot.lane.b32.xlu0 %v213, 121
  %v245 = vpop.permute.xlu0 %244
  %246 = vrot.lane.b32.xlu0 %v214, 121
  %v247 = vpop.permute.xlu0 %246
  %248 = vrot.lane.b32.xlu0 %v215, 121
  %v249 = vpop.permute.xlu0 %248
  %v254 = vsel %vm217, %v221, %v243
  %v255 = vsel %vm217, %v226, %v245
  %v256 = vsel %vm217, %v231, %v247
  %v257 = vsel %vm217, %v236, %v249
  %v258 = vsub.f32 %v23, %v254
  %v259 = vsub.f32 %v25, %v255
  %v260 = vsub.f32 %v27, %v256
  %v261 = vsub.f32 %v29, %v257
  %v262 = vmul.f32 %v258, %v258
  %v263 = vmul.f32 %v259, %v259
  %v264 = vmul.f32 %v260, %v260
  %v265 = vmul.f32 %v261, %v261
  %v266 = vmin.f32 %v262, 16.0
  %v267 = vmin.f32 %v263, 16.0
  %v268 = vmin.f32 %v264, 16.0
  %v269 = vmin.f32 %v265, 16.0
  %s270 = scalar_lea.vmem [#allocation2], 32
  %v271 = vld [vmem:[%s270] sm:$0xff]
  %v272 = vld [vmem:[%s270 + $0x8] sm:$0x3f]
  %v275 = vlaneseq
  %v276 = vshrl.u32 %v275, 7
  %v277 = vsub.s32 0, %v276
  %v278 = vrot.slane %v32, %v277
  %v279 = vlaneseq
  %v280 = vshrl.u32 %v279, 7
  %v281 = vsub.s32 0, %v280
  %v282 = vrot.slane %v33, %v281
  %v285 = vmul.f32 %v266, %v278
  %v286 = vmul.f32 %v267, %v278
  %v287 = vmul.f32 %v268, %v282
  %v288 = vmul.f32 %v269, %v282
  %v289 = vsel %vm52, %v285, 0.0
  %v290 = vsel %vm52, %v287, 0.0
  %v291 = vadd.f32 %v289, %v290
  %v292 = vsel %vm54, %v286, 0.0
  %v293 = vsel %vm54, %v288, 0.0
  %v294 = vadd.f32 %v292, %v293
  %v295 = vadd.f32 %v271, %v291
  %v296 = vadd.f32 %v272, %v294
  %297 = vst.msk [vmem:[%s270] sm:$0xff] %vm52, %v295
  %298 = vst.msk [vmem:[%s270 + $0x8] sm:$0x3f] %vm54, %v296
  %303 = vrot.lane.b32.xlu0 %v23, 121
  %v304 = vpop.permute.xlu0 %303
  %305 = vrot.lane.b32.xlu0 %v25, 121
  %v306 = vpop.permute.xlu0 %305
  %307 = vrot.lane.b32.xlu0 %v27, 121
  %v308 = vpop.permute.xlu0 %307
  %309 = vrot.lane.b32.xlu0 %v29, 121
  %v310 = vpop.permute.xlu0 %309
  %vm315 = vcmask 7168
  %316 = vst.msk [vmem:[#allocation3] sm:$0xff] %vm315, %v304
  %vm317 = vcmask 5120
  %318 = vst.msk [vmem:[#allocation3 + $0x8] sm:$0x3f] %vm317, %v306
  %319 = vst.msk [vmem:[#allocation3 + $0x10] sm:$0xff] %vm315, %v308
  %320 = vst.msk [vmem:[#allocation3 + $0x18] sm:$0x3f] %vm317, %v310
  // Predicated region
  $region18: #{tpu_custom_call.1} parent=0 // pred_check
    %p321 = pneg %p34
  $region19: #{tpu_custom_call.1} parent=0 // pred_check_branch
    %323 = sbr.rel (%p321) target = $region21
  $region20: #{tpu_custom_call.1} parent=0 // pred_region
    %v324 = vld [vmem:[#allocation2] sm:$0xff]
    %v325 = vld [vmem:[#allocation2 + $0x8] sm:$0x3f]
    %v326 = vsel %vm52, %v324, 0.0
    %v327 = vsel %vm54, %v325, 0.0
    %v328 = vadd.f32 %v326, %v327
    %329 = vadd.xlane.f32.xlu0 %v328
    %v330 = vpop.xlane.xlu0 %329
    %v331 = vrot.slane %v330, 4
    %v332 = vadd.f32 %v330, %v331
    %v333 = vrot.slane %v332, 2
    %v334 = vadd.f32 %v332, %v333
    %v335 = vrot.slane %v334, 1
    %v336 = vadd.f32 %v334, %v335
    %s337 = vtos %v336
    %v338 = vld [vmem:[%s171] sm:$0xff]
    %v339 = vld [vmem:[%s171 + $0x8] sm:$0x3f]
    %v340 = vsel %vm52, %v338, 0.0
    %v341 = vsel %vm54, %v339, 0.0
    %v342 = vadd.f32 %v340, %v341
    %343 = vadd.xlane.f32.xlu0 %v342
    %v344 = vpop.xlane.xlu0 %343
    %v345 = vrot.slane %v344, 4
    %v346 = vadd.f32 %v344, %v345
    %v347 = vrot.slane %v346, 2
    %v348 = vadd.f32 %v346, %v347
    %v349 = vrot.slane %v348, 1
    %v350 = vadd.f32 %v348, %v349
    %s351 = vtos %v350
    %v352 = vld [vmem:[%s270] sm:$0xff]
    %v353 = vld [vmem:[%s270 + $0x8] sm:$0x3f]
    %v354 = vsel %vm52, %v352, 0.0
    %v355 = vsel %vm54, %v353, 0.0
    %v356 = vadd.f32 %v354, %v355
    %357 = vadd.xlane.f32.xlu0 %v356
    %v358 = vpop.xlane.xlu0 %357
    %v359 = vrot.slane %v358, 4
    %v360 = vadd.f32 %v358, %v359
    %v361 = vrot.slane %v360, 2
    %v362 = vadd.f32 %v360, %v361
    %v363 = vrot.slane %v362, 1
    %v364 = vadd.f32 %v362, %v363
    %s365 = vtos %v364
    %v366 = vstv %s351
    %v367 = vstv %s365
    %v368 = vsel %vm83, %v366, %v367
    %v369 = vstv %s337
    %v370 = vsel %vm79, %v369, %v368
    %371 = vst [vmem:[%s3] sm:$0x7] %v370
  $region21: #{tpu_custom_call.1} parent=0 // pred_fallthru
    _
  // Predicated region
  $region22: #{tpu_custom_call.1} parent=0 // pred_check
    _
  $region23: #{tpu_custom_call.1} parent=0 // pred_check_branch
    %373 = sbr.rel (0) target = $region25
  $region24: #{tpu_custom_call.1} parent=0 // pred_region
    _
  $region25: #{tpu_custom_call.1} parent=0 // pred_fallthru
    _
  // Predicated region
  $region26: #{tpu_custom_call.1} parent=0 // pred_check
    _
  $region27: #{tpu_custom_call.1} parent=0 // pred_check_branch
    %375 = sbr.rel (0) target = $region29
  $region28: #{tpu_custom_call.1} parent=0 // pred_region
    _
  $region29: #{tpu_custom_call.1} parent=0 // pred_fallthru
    _

</llo_original>
